<compile_context>
chip_gen: v6e
topology: v6e:2x2x1
jax: 0.10.0
libtpu: 0.0.40
codegen_flags: <defaults>
</compile_context>

<pallas_src>
import functools

import jax
import jax.numpy as jnp
from jax.experimental import pallas as pl
from jax.experimental.pallas import tpu as pltpu

HID_SIZE = 64


def _round_up(n, m):
    return ((n + m - 1) // m) * m


def critic_mlp_kernel(x_ref, w1_ref, b1_ref, w2_ref, b2_ref, w3_ref, b3_ref, out_ref):
    # x_ref: (TB, K) f32 (streamed); w*: compute dtype; b1/b2: f32 (VMEM); b3: f32 (SMEM)
    # out_ref: (1, TB) f32 -- batch along lanes (lane-dense, unmasked stores).
    x = x_ref[...].astype(w1_ref.dtype)   # per-tile cast (no-op for f32 compute)

    # Linear(obs, 64) + ReLU   (MXU matmul, f32 accumulation; bias + ReLU on VPU in f32)
    h1 = jnp.dot(x, w1_ref[...], preferred_element_type=jnp.float32)
    h1 = jnp.maximum(h1 + b1_ref[...], 0.0)

    # Linear(64, 64) + ReLU
    h2 = jnp.dot(h1.astype(w2_ref.dtype), w2_ref[...], preferred_element_type=jnp.float32)
    h2 = jnp.maximum(h2 + b2_ref[...], 0.0)

    # Linear(64, 1) as an NT matmul: (1, 64) x (TB, 64)^T -> (1, TB) so the output tile is
    # lane-dense (batch on lanes) instead of a 1-lane masked store.
    v = jax.lax.dot_general(
        w3_ref[...], h2.astype(w3_ref.dtype),
        dimension_numbers=(((1,), (1,)), ((), ())),
        preferred_element_type=jnp.float32,
    )
    out_ref[...] = v + b3_ref[0]


@functools.partial(jax.jit, static_argnames=("block_b", "compute_dtype"))
def model_critic_forward(x, params, *, block_b=4096, compute_dtype=jnp.float32):
    """x: (B, obs) f32 -> (B, 1) f32. Same forward semantics as ModelCritic.forward.

    compute_dtype controls only the MXU operand dtype (bf16 raises MXU throughput on
    v6e/v7x); accumulation, bias adds and ReLU always run in f32.
    """
    w1, b1, w2, b2, w3, b3 = params
    B, K = x.shape
    H = w1.shape[1]

    # Batch tiling: tiles are multiples of 128 so the lane-dense output stores stay
    # unmasked (plain vst), and we keep >= 2 grid steps when the batch allows so the
    # "parallel" axis can be sharded across v7x's two TensorCores.
    Bp = _round_up(B, 128)
    tb = max(128, min(_round_up(block_b, 128), Bp))
    if tb >= Bp and Bp >= 256:
        tb = _round_up(Bp // 2, 128)
    num_tiles = pl.cdiv(B, tb)

    # Weights are tiny (~27 KB): cast them once here; x streams uncopied from HBM.
    w1c = w1.astype(compute_dtype)
    w2c = w2.astype(compute_dtype)
    w3c = w3.astype(compute_dtype)

    flops = 2 * B * (K * H + H * H + H)
    bytes_accessed = (
        B * K * x.dtype.itemsize + B * 4
        + w1c.size * w1c.dtype.itemsize + w2c.size * w2c.dtype.itemsize
        + w3c.size * w3c.dtype.itemsize
        + (b1.size + b2.size + b3.size) * 4
    )

    out = pl.pallas_call(
        critic_mlp_kernel,
        out_shape=jax.ShapeDtypeStruct((1, num_tiles * tb), jnp.float32),
        grid=(num_tiles,),
        in_specs=[
            # x: streamed / double-buffered; the last tile may read rows past B
            # (undefined data) -- rows are independent and sliced off below.
            pl.BlockSpec((tb, K), lambda i: (i, 0)),
            pl.BlockSpec((K, H), lambda i: (0, 0)),             # w1: VMEM-resident (in, out)
            pl.BlockSpec((1, H), lambda i: (0, 0)),             # b1
            pl.BlockSpec((H, H), lambda i: (0, 0)),             # w2
            pl.BlockSpec((1, H), lambda i: (0, 0)),             # b2
            pl.BlockSpec((1, H), lambda i: (0, 0)),             # w3 (PyTorch (out, in) layout)
            pl.BlockSpec(memory_space=pltpu.MemorySpace.SMEM),  # b3: scalar bias in SMEM
        ],
        out_specs=pl.BlockSpec((1, tb), lambda i: (0, i)),       # lane-dense output tile
        compiler_params=pltpu.CompilerParams(
            dimension_semantics=("parallel",),  # shard batch tiles across TCs on v7x
            vmem_limit_bytes=64 * 1024 * 1024,  # large f32 tiles exceed v5e's 16 MiB default
        ),
        cost_estimate=pl.CostEstimate(
            flops=int(flops), transcendentals=0, bytes_accessed=int(bytes_accessed)),
    )(x, w1c, b1, w2c, b2, w3c, b3)

    return out.reshape(num_tiles * tb, 1)[:B]


def init_params(key, obs_size):
    """PyTorch nn.Linear default init: U[-1/sqrt(fan_in), +1/sqrt(fan_in)] for W and b."""
    def uniform(k, shape, fan_in):
        bound = 1.0 / (fan_in ** 0.5)
        return jax.random.uniform(k, shape, jnp.float32, -bound, bound)

    k = jax.random.split(key, 6)
    w1 = uniform(k[0], (obs_size, HID_SIZE), obs_size)   # (in, out)
    b1 = uniform(k[1], (1, HID_SIZE), obs_size)
    w2 = uniform(k[2], (HID_SIZE, HID_SIZE), HID_SIZE)   # (in, out)
    b2 = uniform(k[3], (1, HID_SIZE), HID_SIZE)
    w3 = uniform(k[4], (1, HID_SIZE), HID_SIZE)          # (out, in) -> NT-matmul lhs
    b3 = uniform(k[5], (1,), HID_SIZE)
    return (w1, b1, w2, b2, w3, b3)


def reference_forward(x, params, compute_dtype=jnp.float32):
    """Pure-jnp reference with the same dtype choices as the kernel."""
    w1, b1, w2, b2, w3, b3 = params
    c = compute_dtype
    h1 = jnp.maximum(jnp.dot(x.astype(c), w1.astype(c),
                             preferred_element_type=jnp.float32) + b1, 0.0)
    h2 = jnp.maximum(jnp.dot(h1.astype(c), w2.astype(c),
                             preferred_element_type=jnp.float32) + b2, 0.0)
    v = jnp.dot(h2.astype(c), w3.astype(c).T, preferred_element_type=jnp.float32)
    return v + b3


if __name__ == "__main__":
    OBS_SIZE = 26   # HalfCheetahBulletEnv observation size
    BATCH = 300     # small test batch; with the default tiling this gives 2 tiles + a
                    # boundary block (rows 300..511 of the last tile are garbage, sliced off)

    key = jax.random.PRNGKey(0)
    kx, kp = jax.random.split(key)
    x = jax.random.normal(kx, (BATCH, OBS_SIZE), jnp.float32)
    params = init_params(kp, OBS_SIZE)
    ref_f32 = reference_forward(x, params, jnp.float32)

    # Default f32 path: matches the PyTorch float32 module semantics.
    out_f32 = jax.block_until_ready(model_critic_forward(x, params))
    assert out_f32.shape == (BATCH, 1), out_f32.shape
    assert jnp.allclose(out_f32, ref_f32, atol=1e-5, rtol=1e-5), \
        float(jnp.max(jnp.abs(out_f32 - ref_f32)))

    # Small explicit tile -> exercises >2 grid steps + tail boundary block.
    out_small = jax.block_until_ready(
        model_critic_forward(x, params, block_b=128, compute_dtype=jnp.float32))
    assert out_small.shape == (BATCH, 1), out_small.shape
    assert jnp.allclose(out_small, ref_f32, atol=1e-5, rtol=1e-5), \
        float(jnp.max(jnp.abs(out_small - ref_f32)))

    # Single-tile case (B small): boundary block covers the whole batch.
    x1 = jax.random.normal(jax.random.PRNGKey(1), (96, OBS_SIZE), jnp.float32)
    out1 = jax.block_until_ready(model_critic_forward(x1, params))
    ref1 = reference_forward(x1, params, jnp.float32)
    assert out1.shape == (96, 1), out1.shape
    assert jnp.allclose(out1, ref1, atol=1e-5, rtol=1e-5), \
        float(jnp.max(jnp.abs(out1 - ref1)))

    # bf16 MXU-operand path (perf option for v6e/v7x); accumulation/bias/ReLU stay f32.
    out_bf16 = jax.block_until_ready(
        model_critic_forward(x, params, compute_dtype=jnp.bfloat16))
    ref_bf16 = reference_forward(x, params, jnp.bfloat16)
    assert out_bf16.shape == (BATCH, 1), out_bf16.shape
    assert jnp.allclose(out_bf16, ref_bf16, atol=2e-3, rtol=2e-3), \
        float(jnp.max(jnp.abs(out_bf16 - ref_bf16)))
    assert jnp.allclose(out_bf16, ref_f32, atol=5e-2, rtol=5e-2), \
        float(jnp.max(jnp.abs(out_bf16 - ref_f32)))

    print("KERNEL_OK")
</pallas_src>

<mosaic_0001>
module attributes {stable_mosaic.version = 11 : i64} {
  func.func @critic_mlp_kernel(%arg0: i32, %arg1: memref<256x26xf32, #tpu.memory_space<vmem>>, %arg2: memref<26x64xf32, #tpu.memory_space<vmem>>, %arg3: memref<1x64xf32, #tpu.memory_space<vmem>>, %arg4: memref<64x64xf32, #tpu.memory_space<vmem>>, %arg5: memref<1x64xf32, #tpu.memory_space<vmem>>, %arg6: memref<1x64xf32, #tpu.memory_space<vmem>>, %arg7: memref<1xf32, #tpu.memory_space<smem>>, %arg8: memref<1x256xf32, #tpu.memory_space<vmem>>) attributes {dimension_semantics = [#tpu.dimension_semantics<parallel>], iteration_bounds = array<i64: 2>, scalar_prefetch = 0 : i64, scratch_operands = 0 : i64, tpu.core_type = #tpu.core_type<tc>, window_params = [{transform_indices = @transform_0, window_bounds = array<i64: 256, 26>}, {pipeline_mode = #tpu.pipeline_mode<synchronous>, transform_indices = @transform_1, window_bounds = array<i64: 26, 64>}, {pipeline_mode = #tpu.pipeline_mode<synchronous>, transform_indices = @transform_2, window_bounds = array<i64: 1, 64>}, {pipeline_mode = #tpu.pipeline_mode<synchronous>, transform_indices = @transform_3, window_bounds = array<i64: 64, 64>}, {pipeline_mode = #tpu.pipeline_mode<synchronous>, transform_indices = @transform_4, window_bounds = array<i64: 1, 64>}, {pipeline_mode = #tpu.pipeline_mode<synchronous>, transform_indices = @transform_5, window_bounds = array<i64: 1, 64>}, {transform_indices = @transform_6, window_bounds = array<i64: 1>}, {transform_indices = @transform_7, window_bounds = array<i64: 1, 256>}]} {
    %c0 = arith.constant 0 : index
    %c0_0 = arith.constant 0 : index
    %0 = vector.load %arg1[%c0, %c0_0] : memref<256x26xf32, #tpu.memory_space<vmem>>, vector<256x26xf32>
    %c0_1 = arith.constant 0 : index
    %c0_2 = arith.constant 0 : index
    %1 = vector.load %arg2[%c0_1, %c0_2] : memref<26x64xf32, #tpu.memory_space<vmem>>, vector<26x64xf32>
    %cst = arith.constant dense<0.000000e+00> : vector<256x64xf32>
    %2 = tpu.matmul %0, %1, %cst {dimension_numbers = #tpu.dot_dimension_numbers<[1], [0], [0], [1], [0, 0, 1, 1], [], []>} : vector<256x26xf32>, vector<26x64xf32>, vector<256x64xf32> -> vector<256x64xf32>
    %c0_3 = arith.constant 0 : index
    %c0_4 = arith.constant 0 : index
    %3 = vector.load %arg3[%c0_3, %c0_4] : memref<1x64xf32, #tpu.memory_space<vmem>>, vector<1x64xf32>
    %4 = vector.broadcast %3 : vector<1x64xf32> to vector<256x64xf32>
    %5 = arith.addf %2, %4 : vector<256x64xf32>
    %cst_5 = arith.constant 0.000000e+00 : f32
    %6 = vector.broadcast %cst_5 : f32 to vector<256x64xf32>
    %7 = arith.maximumf %5, %6 : vector<256x64xf32>
    %c0_6 = arith.constant 0 : index
    %c0_7 = arith.constant 0 : index
    %8 = vector.load %arg4[%c0_6, %c0_7] : memref<64x64xf32, #tpu.memory_space<vmem>>, vector<64x64xf32>
    %cst_8 = arith.constant dense<0.000000e+00> : vector<256x64xf32>
    %9 = tpu.matmul %7, %8, %cst_8 {dimension_numbers = #tpu.dot_dimension_numbers<[1], [0], [0], [1], [0, 0, 1, 1], [], []>} : vector<256x64xf32>, vector<64x64xf32>, vector<256x64xf32> -> vector<256x64xf32>
    %c0_9 = arith.constant 0 : index
    %c0_10 = arith.constant 0 : index
    %10 = vector.load %arg5[%c0_9, %c0_10] : memref<1x64xf32, #tpu.memory_space<vmem>>, vector<1x64xf32>
    %11 = vector.broadcast %10 : vector<1x64xf32> to vector<256x64xf32>
    %12 = arith.addf %9, %11 : vector<256x64xf32>
    %cst_11 = arith.constant 0.000000e+00 : f32
    %13 = vector.broadcast %cst_11 : f32 to vector<256x64xf32>
    %14 = arith.maximumf %12, %13 : vector<256x64xf32>
    %c0_12 = arith.constant 0 : index
    %c0_13 = arith.constant 0 : index
    %15 = vector.load %arg6[%c0_12, %c0_13] : memref<1x64xf32, #tpu.memory_space<vmem>>, vector<1x64xf32>
    %cst_14 = arith.constant dense<0.000000e+00> : vector<1x256xf32>
    %16 = tpu.matmul %15, %14, %cst_14 {dimension_numbers = #tpu.dot_dimension_numbers<[1], [1], [0], [0], [0, 0, 1, 0], [], []>} : vector<1x64xf32>, vector<256x64xf32>, vector<1x256xf32> -> vector<1x256xf32>
    %c0_15 = arith.constant 0 : index
    %17 = memref.load %arg7[%c0_15] : memref<1xf32, #tpu.memory_space<smem>>
    %18 = vector.broadcast %17 : f32 to vector<1x256xf32>
    %19 = arith.addf %16, %18 : vector<1x256xf32>
    %c0_16 = arith.constant 0 : index
    %c0_17 = arith.constant 0 : index
    %20 = vector.load %arg8[%c0_16, %c0_17] : memref<1x256xf32, #tpu.memory_space<vmem>>, vector<1x256xf32>
    tpu.vector_store %arg8[%c0_16, %c0_17], %19 {strides = array<i32>} : memref<1x256xf32, #tpu.memory_space<vmem>>, vector<1x256xf32>,
    return
  }
  func.func @transform_0(%arg0: i32) -> (i32, i32) {
    %c0_i32 = arith.constant 0 : i32
    %c0_i32_0 = arith.constant 0 : i32
    return %arg0, %c0_i32 : i32, i32
  }
  func.func @transform_1(%arg0: i32) -> (i32, i32) {
    %c0_i32 = arith.constant 0 : i32
    %c0_i32_0 = arith.constant 0 : i32
    %c0_i32_1 = arith.constant 0 : i32
    return %c0_i32, %c0_i32_0 : i32, i32
  }
  func.func @transform_2(%arg0: i32) -> (i32, i32) {
    %c0_i32 = arith.constant 0 : i32
    %c0_i32_0 = arith.constant 0 : i32
    %c0_i32_1 = arith.constant 0 : i32
    return %c0_i32, %c0_i32_0 : i32, i32
  }
  func.func @transform_3(%arg0: i32) -> (i32, i32) {
    %c0_i32 = arith.constant 0 : i32
    %c0_i32_0 = arith.constant 0 : i32
    %c0_i32_1 = arith.constant 0 : i32
    return %c0_i32, %c0_i32_0 : i32, i32
  }
  func.func @transform_4(%arg0: i32) -> (i32, i32) {
    %c0_i32 = arith.constant 0 : i32
    %c0_i32_0 = arith.constant 0 : i32
    %c0_i32_1 = arith.constant 0 : i32
    return %c0_i32, %c0_i32_0 : i32, i32
  }
  func.func @transform_5(%arg0: i32) -> (i32, i32) {
    %c0_i32 = arith.constant 0 : i32
    %c0_i32_0 = arith.constant 0 : i32
    %c0_i32_1 = arith.constant 0 : i32
    return %c0_i32, %c0_i32_0 : i32, i32
  }
  func.func @transform_6(%arg0: i32) -> i32 {
    %c0_i32 = arith.constant 0 : i32
    %c0_i32_0 = arith.constant 0 : i32
    return %c0_i32 : i32
  }
  func.func @transform_7(%arg0: i32) -> (i32, i32) {
    %c0_i32 = arith.constant 0 : i32
    %c0_i32_0 = arith.constant 0 : i32
    return %c0_i32, %arg0 : i32, i32
  }
}

</mosaic_0001>

<llo_original>
// kernel: model_critic_forward.1
$region0: #{model_critic_forward.1}
  #allocation0 [shape = 'u32[]', space=smem, size = 0x4, offset = 0x4, fixed_abs, tag = 'smem constant byte address 0x4 - core index']
  #allocation1 [shape = 'u32[144,128]{1,0:T(1,128)}', space=vmem, size = 0x12000, scoped, tag = 'internal scratch']
  #allocation2 [shape = 'f32[1]{0:T(128)S(6)}', space=smem, size = 0x200, scoped, tag = 'scoped memory for model_critic_forward.1']
  %s0 = inlined_call_operand.vmem [shape: f32[300,26], index: 0, kind: input, shape index: {}]
  %s1 = inlined_call_operand.vmem [shape: f32[26,64], index: 1, kind: input, shape index: {}]
  %s2 = inlined_call_operand.vmem [shape: f32[1,64], index: 2, kind: input, shape index: {}]
  %s3 = inlined_call_operand.vmem [shape: f32[64,64], index: 3, kind: input, shape index: {}]
  %s4 = inlined_call_operand.vmem [shape: f32[1,64], index: 4, kind: input, shape index: {}]
  %s5 = inlined_call_operand.vmem [shape: f32[1,64], index: 5, kind: input, shape index: {}]
  %s6 = inlined_call_operand.<no memory space> [shape: f32[1], index: 6, kind: input, shape index: {}]
  %s7 = inlined_call_operand.vmem [shape: f32[1,512], index: 7, kind: output, shape index: {}]
  %s8 = sld [smem:[#allocation0]]
  $region61: #{model_critic_forward.1} parent=0
    _
  %s10 = ssub.s32 1, %s8
  %s11 = scalar_select 0, %s10, %s8
  %12 = sst [smem:[#allocation2]] %s6
  loop: start=0, step=1, limit=4
  $region2: #{model_critic_forward.1} parent=0 // loop_pre_header
    _
  $region3: #{model_critic_forward.1} parent=0 // loop_header
    %s14 = sphi 0, %s18
    %p15 = scmp.ge.s32.totalorder %s14, 4
    %s24 = sphi 0, %s26
    %s27 = sphi 0, %s24
    %s28 = sphi 0, %s27
    %s44 = sphi 0, %s28
    %s48 = sphi 0, %s48
    %s50 = sphi 0, %s48
    %s51 = sphi 0, %s50
    %s65 = sphi 0, %s51
    %s69 = sphi 0, %s69
    %s71 = sphi 0, %s69
    %s72 = sphi 0, %s71
    %s86 = sphi 0, %s72
    %s90 = sphi 0, %s90
    %s92 = sphi 0, %s90
    %s93 = sphi 0, %s92
    %s107 = sphi 0, %s93
    %s111 = sphi 0, %s111
    %s113 = sphi 0, %s111
    %s114 = sphi 0, %s113
    %s128 = sphi 0, %s114
    %s132 = sphi 0, %s132
    %s134 = sphi 0, %s132
    %s135 = sphi 0, %s134
    %s149 = sphi 0, %s135
    %s153 = sphi 0, %s153
    %s155 = sphi 0, %s153
    %s156 = sphi 0, %s155
    %s170 = sphi 0, %s156
    %s176 = sphi 0, %s178
    %s179 = sphi 0, %s176
    %s180 = sphi 0, %s179
    %s196 = sphi 0, %s180
  $region4: #{model_critic_forward.1} parent=0 // loop_header_branch
    %17 = sbr.rel (%p15) target = $region8
  $region5: #{model_critic_forward.1} parent=0 // loop_body
    %s19 = ssub.s32 %s14, 1
    %s20 = ssub.s32 %s14, 2
    %s21 = sadd.s32 %s14, 1
    %s22 = ssub.s32 %s14, %s21
    %p23 = scmp.eq.s32.totalorder %s22, 0
    %s25 = sadd.s32 %s24, 1
    %s26 = scalar_select %p23, %s24, %s25
    %p29 = pneg %p23
    %p30 = scmp.eq.s32.totalorder %s14, 1
    %p31 = por %p29, %p30
    %p32 = scmp.ne.s32.totalorder %s24, %s27
    %p33 = scmp.eq.s32.totalorder %s14, 0
    %p34 = por %p32, %p33
    %p35 = scmp.ne.s32.totalorder %s24, %s27
    %p36 = scmp.eq.s32.totalorder %s19, 1
    %p37 = por %p35, %p36
    %p38 = scmp.ne.s32.totalorder %s27, %s28
    %p39 = scmp.eq.s32.totalorder %s19, 0
    %p40 = por %p38, %p39
    %p41 = scmp.ne.s32.totalorder %s27, %s28
    %p42 = scmp.eq.s32.totalorder %s20, 1
    %p43 = por %p41, %p42
    %p45 = scmp.ne.s32.totalorder %s28, %s44
    %p46 = scmp.eq.s32.totalorder %s20, 0
    %p47 = por %p45, %p46
    %s49 = sadd.s32 %s48, 1
    %p52 = scmp.eq.s32.totalorder %s14, 1
    %p53 = scmp.ne.s32.totalorder %s48, %s50
    %p54 = scmp.eq.s32.totalorder %s14, 0
    %p55 = por %p53, %p54
    %p56 = scmp.ne.s32.totalorder %s48, %s50
    %p57 = scmp.eq.s32.totalorder %s19, 1
    %p58 = por %p56, %p57
    %p59 = scmp.ne.s32.totalorder %s50, %s51
    %p60 = scmp.eq.s32.totalorder %s19, 0
    %p61 = por %p59, %p60
    %p62 = scmp.ne.s32.totalorder %s50, %s51
    %p63 = scmp.eq.s32.totalorder %s20, 1
    %p64 = por %p62, %p63
    %p66 = scmp.ne.s32.totalorder %s51, %s65
    %p67 = scmp.eq.s32.totalorder %s20, 0
    %p68 = por %p66, %p67
    %s70 = sadd.s32 %s69, 1
    %p73 = scmp.eq.s32.totalorder %s14, 1
    %p74 = scmp.ne.s32.totalorder %s69, %s71
    %p75 = scmp.eq.s32.totalorder %s14, 0
    %p76 = por %p74, %p75
    %p77 = scmp.ne.s32.totalorder %s69, %s71
    %p78 = scmp.eq.s32.totalorder %s19, 1
    %p79 = por %p77, %p78
    %p80 = scmp.ne.s32.totalorder %s71, %s72
    %p81 = scmp.eq.s32.totalorder %s19, 0
    %p82 = por %p80, %p81
    %p83 = scmp.ne.s32.totalorder %s71, %s72
    %p84 = scmp.eq.s32.totalorder %s20, 1
    %p85 = por %p83, %p84
    %p87 = scmp.ne.s32.totalorder %s72, %s86
    %p88 = scmp.eq.s32.totalorder %s20, 0
    %p89 = por %p87, %p88
    %s91 = sadd.s32 %s90, 1
    %p94 = scmp.eq.s32.totalorder %s14, 1
    %p95 = scmp.ne.s32.totalorder %s90, %s92
    %p96 = scmp.eq.s32.totalorder %s14, 0
    %p97 = por %p95, %p96
    %p98 = scmp.ne.s32.totalorder %s90, %s92
    %p99 = scmp.eq.s32.totalorder %s19, 1
    %p100 = por %p98, %p99
    %p101 = scmp.ne.s32.totalorder %s92, %s93
    %p102 = scmp.eq.s32.totalorder %s19, 0
    %p103 = por %p101, %p102
    %p104 = scmp.ne.s32.totalorder %s92, %s93
    %p105 = scmp.eq.s32.totalorder %s20, 1
    %p106 = por %p104, %p105
    %p108 = scmp.ne.s32.totalorder %s93, %s107
    %p109 = scmp.eq.s32.totalorder %s20, 0
    %p110 = por %p108, %p109
    %s112 = sadd.s32 %s111, 1
    %p115 = scmp.eq.s32.totalorder %s14, 1
    %p116 = scmp.ne.s32.totalorder %s111, %s113
    %p117 = scmp.eq.s32.totalorder %s14, 0
    %p118 = por %p116, %p117
    %p119 = scmp.ne.s32.totalorder %s111, %s113
    %p120 = scmp.eq.s32.totalorder %s19, 1
    %p121 = por %p119, %p120
    %p122 = scmp.ne.s32.totalorder %s113, %s114
    %p123 = scmp.eq.s32.totalorder %s19, 0
    %p124 = por %p122, %p123
    %p125 = scmp.ne.s32.totalorder %s113, %s114
    %p126 = scmp.eq.s32.totalorder %s20, 1
    %p127 = por %p125, %p126
    %p129 = scmp.ne.s32.totalorder %s114, %s128
    %p130 = scmp.eq.s32.totalorder %s20, 0
    %p131 = por %p129, %p130
    %s133 = sadd.s32 %s132, 1
    %p136 = scmp.eq.s32.totalorder %s14, 1
    %p137 = scmp.ne.s32.totalorder %s132, %s134
    %p138 = scmp.eq.s32.totalorder %s14, 0
    %p139 = por %p137, %p138
    %p140 = scmp.ne.s32.totalorder %s132, %s134
    %p141 = scmp.eq.s32.totalorder %s19, 1
    %p142 = por %p140, %p141
    %p143 = scmp.ne.s32.totalorder %s134, %s135
    %p144 = scmp.eq.s32.totalorder %s19, 0
    %p145 = por %p143, %p144
    %p146 = scmp.ne.s32.totalorder %s134, %s135
    %p147 = scmp.eq.s32.totalorder %s20, 1
    %p148 = por %p146, %p147
    %p150 = scmp.ne.s32.totalorder %s135, %s149
    %p151 = scmp.eq.s32.totalorder %s20, 0
    %p152 = por %p150, %p151
    %s154 = sadd.s32 %s153, 1
    %p157 = scmp.eq.s32.totalorder %s14, 1
    %p158 = scmp.ne.s32.totalorder %s153, %s155
    %p159 = scmp.eq.s32.totalorder %s14, 0
    %p160 = por %p158, %p159
    %p161 = scmp.ne.s32.totalorder %s153, %s155
    %p162 = scmp.eq.s32.totalorder %s19, 1
    %p163 = por %p161, %p162
    %p164 = scmp.ne.s32.totalorder %s155, %s156
    %p165 = scmp.eq.s32.totalorder %s19, 0
    %p166 = por %p164, %p165
    %p167 = scmp.ne.s32.totalorder %s155, %s156
    %p168 = scmp.eq.s32.totalorder %s20, 1
    %p169 = por %p167, %p168
    %p171 = scmp.ne.s32.totalorder %s156, %s170
    %p172 = scmp.eq.s32.totalorder %s20, 0
    %p173 = por %p171, %p172
    %s174 = ssub.s32 %s14, %s21
    %p175 = scmp.eq.s32.totalorder %s174, 0
    %s177 = sadd.s32 %s176, 1
    %s178 = scalar_select %p175, %s176, %s177
    %p181 = pneg %p175
    %p182 = scmp.eq.s32.totalorder %s14, 1
    %p183 = por %p181, %p182
    %p184 = scmp.ne.s32.totalorder %s176, %s179
    %p185 = scmp.eq.s32.totalorder %s14, 0
    %p186 = por %p184, %p185
    %p187 = scmp.ne.s32.totalorder %s176, %s179
    %p188 = scmp.eq.s32.totalorder %s19, 1
    %p189 = por %p187, %p188
    %p190 = scmp.ne.s32.totalorder %s179, %s180
    %p191 = scmp.eq.s32.totalorder %s19, 0
    %p192 = por %p190, %p191
    %p193 = scmp.ne.s32.totalorder %s179, %s180
    %p194 = scmp.eq.s32.totalorder %s20, 1
    %p195 = por %p193, %p194
    %p197 = scmp.ne.s32.totalorder %s180, %s196
    %p198 = scmp.eq.s32.totalorder %s20, 0
    %p199 = por %p197, %p198
    %p200 = scmp.le.s32.totalorder 1, %s14
    %p201 = scmp.lt.s32.totalorder %s14, 3
    %p202 = pnand %p200, %p201
    %p203 = pneg %p202
    // Predicated region
    $region9: #{model_critic_forward.1} parent=5 // pred_check
      _
    $region10: #{model_critic_forward.1} parent=5 // pred_check_branch
      %205 = sbr.rel (%p202) target = $region12
    $region11: #{model_critic_forward.1} parent=5 // pred_region
      %s206 = ssub.s32 %s14, 1
      // Predicated region
      $region13: #{model_critic_forward.1} parent=11 // pred_check
        %p207 = pneg %p61
      $region14: #{model_critic_forward.1} parent=11 // pred_check_branch
        %209 = sbr.rel (%p207) target = $region16
      $region15: #{model_critic_forward.1} parent=11 // pred_region
        _
      $region16: #{model_critic_forward.1} parent=11 // pred_fallthru
        _
      // Predicated region
      $region17: #{model_critic_forward.1} parent=11 // pred_check
        %p210 = pneg %p82
      $region18: #{model_critic_forward.1} parent=11 // pred_check_branch
        %212 = sbr.rel (%p210) target = $region20
      $region19: #{model_critic_forward.1} parent=11 // pred_region
        _
      $region20: #{model_critic_forward.1} parent=11 // pred_fallthru
        _
      // Predicated region
      $region21: #{model_critic_forward.1} parent=11 // pred_check
        %p213 = pneg %p103
      $region22: #{model_critic_forward.1} parent=11 // pred_check_branch
        %215 = sbr.rel (%p213) target = $region24
      $region23: #{model_critic_forward.1} parent=11 // pred_region
        _
      $region24: #{model_critic_forward.1} parent=11 // pred_fallthru
        _
      // Predicated region
      $region25: #{model_critic_forward.1} parent=11 // pred_check
        %p216 = pneg %p124
      $region26: #{model_critic_forward.1} parent=11 // pred_check_branch
        %218 = sbr.rel (%p216) target = $region28
      $region27: #{model_critic_forward.1} parent=11 // pred_region
        _
      $region28: #{model_critic_forward.1} parent=11 // pred_fallthru
        _
      // Predicated region
      $region29: #{model_critic_forward.1} parent=11 // pred_check
        %p219 = pneg %p145
      $region30: #{model_critic_forward.1} parent=11 // pred_check_branch
        %221 = sbr.rel (%p219) target = $region32
      $region31: #{model_critic_forward.1} parent=11 // pred_region
        _
      $region32: #{model_critic_forward.1} parent=11 // pred_fallthru
        _
      // Predicated region
      $region33: #{model_critic_forward.1} parent=11 // pred_check
        %p222 = pneg %p166
      $region34: #{model_critic_forward.1} parent=11 // pred_check_branch
        %224 = sbr.rel (%p222) target = $region36
      $region35: #{model_critic_forward.1} parent=11 // pred_region
        _
      $region36: #{model_critic_forward.1} parent=11 // pred_fallthru
        _
    $region12: #{model_critic_forward.1} parent=5 // pred_fallthru
      _
    %p225 = scmp.lt.s32.totalorder %s14, 2
    // Predicated region
    $region37: #{model_critic_forward.1} parent=5 // pred_check
      %p226 = pneg %p225
    $region38: #{model_critic_forward.1} parent=5 // pred_check_branch
      %228 = sbr.rel (%p226) target = $region40
    $region39: #{model_critic_forward.1} parent=5 // pred_region
      // Predicated region
      $region41: #{model_critic_forward.1} parent=39 // pred_check
        %p229 = pneg %p34
      $region42: #{model_critic_forward.1} parent=39 // pred_check_branch
        %231 = sbr.rel (%p229) target = $region44
      $region43: #{model_critic_forward.1} parent=39 // pred_region
        %s232 = smul.u32 32, %s14
        %s233 = ssub.s32 38, %s232
        %p234 = scmp.lt.s32.totalorder %s233, 32
        %s235 = scalar_select %p234, %s233, 32
        %s236 = smul.u32 128, %s235
        %p237 = scmp.lt.s32.totalorder %s232, 37
        %s238 = scalar_select %p237, %s232, 37
        %s239 = smul.addr %s238, 8
        %s240 = scalar_lea.vmem %s0, %s239
        %s241 = smul.u32 32, %s14
        %s242 = ssub.s32 38, %s241
        %p243 = scmp.lt.s32.totalorder %s242, 32
        %s244 = scalar_select %p243, %s242, 32
        %s245 = smul.u32 128, %s244
      $region44: #{model_critic_forward.1} parent=39 // pred_fallthru
        _
    $region40: #{model_critic_forward.1} parent=5 // pred_fallthru
      _
    %p246 = scmp.le.s32.totalorder 1, %s14
    %p247 = scmp.lt.s32.totalorder %s14, 3
    %p248 = pnand %p246, %p247
    %p249 = pneg %p248
    // Predicated region
    $region45: #{model_critic_forward.1} parent=5 // pred_check
      _
    $region46: #{model_critic_forward.1} parent=5 // pred_check_branch
      %251 = sbr.rel (%p248) target = $region48
    $region47: #{model_critic_forward.1} parent=5 // pred_region
      %s252 = ssub.s32 %s14, 1
      %s253 = smul.u32 32, %s19
      %s254 = ssub.s32 38, %s253
      %p255 = scmp.lt.s32.totalorder %s254, 32
      %s256 = scalar_select %p255, %s254, 32
      %s257 = smul.u32 128, %s256
      %p258 = scmp.lt.s32.totalorder %s253, 37
      %s259 = scalar_select %p258, %s253, 37
      %s260 = smul.addr %s259, 8
      %s261 = scalar_lea.vmem %s0, %s260
      %p262 = pneg %p40
      %p263 = pneg %p37
      %p264 = pneg %p61
      %p265 = pneg %p58
      %p266 = pneg %p82
      %p267 = pneg %p79
      %p268 = pneg %p103
      %p269 = pneg %p100
      %p270 = pneg %p124
      %p271 = pneg %p121
      %p272 = pneg %p145
      %p273 = pneg %p142
      %p274 = pneg %p166
      %p275 = pneg %p163
      %p276 = pneg %p192
      %p277 = pneg %p189
      %s278 = smul.u32 2, %s19
      %p279 = scmp.lt.s32.totalorder %s278, 3
      %s280 = scalar_select %p279, %s278, 3
      %s281 = scalar_lea.vmem %s7, %s280
      %s282 = smul.u32 32, %s19
      %s283 = ssub.s32 38, %s282
      %p284 = scmp.lt.s32.totalorder %s283, 32
      %s285 = scalar_select %p284, %s283, 32
      %s286 = smul.u32 128, %s285
      %p287 = scmp.lt.s32.totalorder %s282, 37
      %s288 = scalar_select %p287, %s282, 37
      %s289 = smul.addr %s288, 8
      %s290 = scalar_lea.vmem %s0, %s289
      %s291 = smul.u32 32, %s19
      %s292 = ssub.s32 38, %s291
      %p293 = scmp.lt.s32.totalorder %s292, 32
      %s294 = scalar_select %p293, %s292, 32
      %s295 = smul.u32 128, %s294
      %s296 = smul.u32 2, %s19
      %p297 = scmp.lt.s32.totalorder %s296, 3
      %s298 = scalar_select %p297, %s296, 3
      %s299 = scalar_lea.vmem %s7, %s298
      %s300 = smul.u32 2, %s19
      %v301 = vld [vmem:[%s290] sm:$0xff]
      %v302 = vld [vmem:[%s290 + $0x8] sm:$0xff]
      %v303 = vld [vmem:[%s290 + $0x10] sm:$0xff]
      %v304 = vld [vmem:[%s290 + $0x18] sm:$0xff]
      %v305 = vld [vmem:[%s290 + $0x20] sm:$0xff]
      %v306 = vld [vmem:[%s290 + $0x28] sm:$0xff]
      %v307 = vld [vmem:[%s290 + $0x30] sm:$0xff]
      %v308 = vld [vmem:[%s290 + $0x38] sm:$0xff]
      %v309 = vld [vmem:[%s290 + $0x40] sm:$0xff]
      %v310 = vld [vmem:[%s290 + $0x48] sm:$0xff]
      %v311 = vld [vmem:[%s290 + $0x50] sm:$0xff]
      %v312 = vld [vmem:[%s290 + $0x58] sm:$0xff]
      %v313 = vld [vmem:[%s290 + $0x60] sm:$0xff]
      %v314 = vld [vmem:[%s290 + $0x68] sm:$0xff]
      %v315 = vld [vmem:[%s290 + $0x70] sm:$0xff]
      %v316 = vld [vmem:[%s290 + $0x78] sm:$0xff]
      %v317 = vld [vmem:[%s290 + $0x80] sm:$0xff]
      %v318 = vld [vmem:[%s290 + $0x88] sm:$0xff]
      %v319 = vld [vmem:[%s290 + $0x90] sm:$0xff]
      %v320 = vld [vmem:[%s290 + $0x98] sm:$0xff]
      %v321 = vld [vmem:[%s290 + $0xa0] sm:$0xff]
      %v322 = vld [vmem:[%s290 + $0xa8] sm:$0xff]
      %v323 = vld [vmem:[%s290 + $0xb0] sm:$0xff]
      %v324 = vld [vmem:[%s290 + $0xb8] sm:$0xff]
      %v325 = vld [vmem:[%s290 + $0xc0] sm:$0xff]
      %v326 = vld [vmem:[%s290 + $0xc8] sm:$0xff]
      %v327 = vld [vmem:[%s290 + $0xd0] sm:$0xff]
      %v328 = vld [vmem:[%s290 + $0xd8] sm:$0xff]
      %v329 = vld [vmem:[%s290 + $0xe0] sm:$0xff]
      %v330 = vld [vmem:[%s290 + $0xe8] sm:$0xff]
      %v331 = vld [vmem:[%s290 + $0xf0] sm:$0xff]
      %v332 = vld [vmem:[%s290 + $0xf8] sm:$0xff]
      %v333 = vld [vmem:[%s1] sm:$0xff]
      %v334 = vld [vmem:[%s1 + $0x8] sm:$0xff]
      %v335 = vld [vmem:[%s1 + $0x10] sm:$0xff]
      %v336 = vld [vmem:[%s1 + $0x18] sm:$0x3]
      %v337 = vld [vmem:[%s2] sm:$0x1]
      %v339 = vlaneseq
      %v340 = vshrl.u32 %v339, 7
      %v341 = vsub.s32 0, %v340
      %v342 = vrot.slane %v337, %v341
      %vm344 = vcmask 211968
      %v346 = vsel %vm344, %v301, 0
      %v349 = vsel %vm344, %v302, 0
      %v352 = vsel %vm344, %v303, 0
      %v355 = vsel %vm344, %v304, 0
      %v358 = vsel %vm344, %v305, 0
      %v361 = vsel %vm344, %v306, 0
      %v364 = vsel %vm344, %v307, 0
      %v367 = vsel %vm344, %v308, 0
      %v370 = vsel %vm344, %v309, 0
      %v373 = vsel %vm344, %v310, 0
      %v376 = vsel %vm344, %v311, 0
      %v379 = vsel %vm344, %v312, 0
      %v382 = vsel %vm344, %v313, 0
      %v385 = vsel %vm344, %v314, 0
      %v388 = vsel %vm344, %v315, 0
      %v391 = vsel %vm344, %v316, 0
      %v394 = vsel %vm344, %v317, 0
      %v397 = vsel %vm344, %v318, 0
      %v400 = vsel %vm344, %v319, 0
      %v403 = vsel %vm344, %v320, 0
      %v406 = vsel %vm344, %v321, 0
      %v409 = vsel %vm344, %v322, 0
      %v412 = vsel %vm344, %v323, 0
      %v415 = vsel %vm344, %v324, 0
      %v418 = vsel %vm344, %v325, 0
      %v421 = vsel %vm344, %v326, 0
      %v424 = vsel %vm344, %v327, 0
      %v427 = vsel %vm344, %v328, 0
      %v430 = vsel %vm344, %v329, 0
      %v433 = vsel %vm344, %v330, 0
      %v436 = vsel %vm344, %v331, 0
      %v439 = vsel %vm344, %v332, 0
      %vm441 = vcmask 1041408
      %v443 = vsel %vm441, %v336, 0
      %445 = vmatprep.subr.mxu0 0.0
      %446 = vmatpush1.msra.mxu0 0.0
      %447 = vmatprep.subr.mxu0 0.0
      %448 = vmatpush1.msra.mxu0 0.0
      %449 = vmatprep.subr.mxu0 0.0
      %450 = vmatpush1.msra.mxu0 0.0
      %451 = vmatprep.subr.mxu0 0.0
      %452 = vmatpush1.msra.mxu0 0.0
      %453 = vmatprep.subr.mxu0 0.0
      %454 = vmatpush1.msra.mxu0 0.0
      %455 = vmatprep.subr.mxu0 0.0
      %456 = vmatpush1.msra.mxu0 0.0
      %457 = vmatprep.subr.mxu0 0.0
      %458 = vmatpush1.msra.mxu0 0.0
      %459 = vmatprep.subr.mxu0 0.0
      %460 = vmatpush1.msra.mxu0 0.0
      %461 = vmatprep.subr.mxu0 0.0
      %462 = vmatpush1.msra.mxu0 0.0
      %463 = vmatprep.subr.mxu0 0.0
      %464 = vmatpush1.msra.mxu0 0.0
      %465 = vmatprep.subr.mxu0 0.0
      %466 = vmatpush1.msra.mxu0 0.0
      %467 = vmatprep.subr.mxu0 0.0
      %468 = vmatpush1.msra.mxu0 0.0
      %469 = vmatprep.subr.mxu0 0.0
      %470 = vmatpush1.msra.mxu0 %v443
      %471 = vmatprep.subr.mxu0 0.0
      %472 = vmatpush1.msra.mxu0 %v335
      %473 = vmatprep.subr.mxu0 0.0
      %474 = vmatpush1.msra.mxu0 %v334
      %475 = vmatprep.subr.mxu0 0.0
      %476 = vmatpush1.msra.mxu0 %v333
      %477 = vmatprep.subr.mxu0 0.0
      %478 = vmatpush2.msra.mxu0 0.0
      %479 = vmatprep.subr.mxu0 0.0
      %480 = vmatpush2.msra.mxu0 0.0
      %481 = vmatprep.subr.mxu0 0.0
      %482 = vmatpush2.msra.mxu0 0.0
      %483 = vmatprep.subr.mxu0 0.0
      %484 = vmatpush2.msra.mxu0 0.0
      %485 = vmatprep.subr.mxu0 0.0
      %486 = vmatpush2.msra.mxu0 0.0
      %487 = vmatprep.subr.mxu0 0.0
      %488 = vmatpush2.msra.mxu0 0.0
      %489 = vmatprep.subr.mxu0 0.0
      %490 = vmatpush2.msra.mxu0 0.0
      %491 = vmatprep.subr.mxu0 0.0
      %492 = vmatpush2.msra.mxu0 0.0
      %493 = vmatprep.subr.mxu0 0.0
      %494 = vmatpush2.msra.mxu0 0.0
      %495 = vmatprep.subr.mxu0 0.0
      %496 = vmatpush2.msra.mxu0 0.0
      %497 = vmatprep.subr.mxu0 0.0
      %498 = vmatpush2.msra.mxu0 0.0
      %499 = vmatprep.subr.mxu0 0.0
      %500 = vmatpush2.msra.mxu0 0.0
      %501 = vmatprep.subr.mxu0 0.0
      %502 = vmatpush2.msra.mxu0 0.0
      %503 = vmatprep.subr.mxu0 0.0
      %504 = vmatpush2.msra.mxu0 0.0
      %505 = vmatprep.subr.mxu0 0.0
      %506 = vmatpush2.msra.mxu0 0.0
      %507 = vmatprep.subr.mxu0 0.0
      %508 = vmatpush2.msra.mxu0 0.0
      %509 = vmatprep.mubr.f32.mxu0 0.0
      %510 = vmatmul.mubr.f32.gmra.mxu0 %v346
      %v511 = vpop.f32.mrf.mxu0
      %v512 = vadd.f32 %v342, %v511
      %v513 = vpop.f32.mrf.mxu0
      %514 = vmatprep.mubr.f32.mxu0 0.0
      %515 = vmatmul.mubr.f32.gmra.mxu0 %v349
      %v516 = vpop.f32.mrf.mxu0
      %v517 = vadd.f32 %v342, %v516
      %v518 = vpop.f32.mrf.mxu0
      %519 = vmatprep.mubr.f32.mxu0 0.0
      %520 = vmatmul.mubr.f32.gmra.mxu0 %v352
      %v521 = vpop.f32.mrf.mxu0
      %v522 = vadd.f32 %v342, %v521
      %v523 = vpop.f32.mrf.mxu0
      %524 = vmatprep.mubr.f32.mxu0 0.0
      %525 = vmatmul.mubr.f32.gmra.mxu0 %v355
      %v526 = vpop.f32.mrf.mxu0
      %v527 = vadd.f32 %v342, %v526
      %v528 = vpop.f32.mrf.mxu0
      %529 = vmatprep.mubr.f32.mxu0 0.0
      %530 = vmatmul.mubr.f32.gmra.mxu0 %v358
      %v531 = vpop.f32.mrf.mxu0
      %v532 = vadd.f32 %v342, %v531
      %v533 = vpop.f32.mrf.mxu0
      %534 = vmatprep.mubr.f32.mxu0 0.0
      %535 = vmatmul.mubr.f32.gmra.mxu0 %v361
      %v536 = vpop.f32.mrf.mxu0
      %v537 = vadd.f32 %v342, %v536
      %v538 = vpop.f32.mrf.mxu0
      %539 = vmatprep.mubr.f32.mxu0 0.0
      %540 = vmatmul.mubr.f32.gmra.mxu0 %v364
      %v541 = vpop.f32.mrf.mxu0
      %v542 = vadd.f32 %v342, %v541
      %v543 = vpop.f32.mrf.mxu0
      %544 = vmatprep.mubr.f32.mxu0 0.0
      %545 = vmatmul.mubr.f32.gmra.mxu0 %v367
      %v546 = vpop.f32.mrf.mxu0
      %v547 = vadd.f32 %v342, %v546
      %v548 = vpop.f32.mrf.mxu0
      %549 = vmatprep.mubr.f32.mxu0 0.0
      %550 = vmatmul.mubr.f32.gmra.mxu0 %v370
      %v551 = vpop.f32.mrf.mxu0
      %v552 = vadd.f32 %v342, %v551
      %v553 = vpop.f32.mrf.mxu0
      %554 = vmatprep.mubr.f32.mxu0 0.0
      %555 = vmatmul.mubr.f32.gmra.mxu0 %v373
      %v556 = vpop.f32.mrf.mxu0
      %v557 = vadd.f32 %v342, %v556
      %v558 = vpop.f32.mrf.mxu0
      %559 = vmatprep.mubr.f32.mxu0 0.0
      %560 = vmatmul.mubr.f32.gmra.mxu0 %v376
      %v561 = vpop.f32.mrf.mxu0
      %v562 = vadd.f32 %v342, %v561
      %v563 = vpop.f32.mrf.mxu0
      %564 = vmatprep.mubr.f32.mxu0 0.0
      %565 = vmatmul.mubr.f32.gmra.mxu0 %v379
      %v566 = vpop.f32.mrf.mxu0
      %v567 = vadd.f32 %v342, %v566
      %v568 = vpop.f32.mrf.mxu0
      %569 = vmatprep.mubr.f32.mxu0 0.0
      %570 = vmatmul.mubr.f32.gmra.mxu0 %v382
      %v571 = vpop.f32.mrf.mxu0
      %v572 = vadd.f32 %v342, %v571
      %v573 = vpop.f32.mrf.mxu0
      %574 = vmatprep.mubr.f32.mxu0 0.0
      %575 = vmatmul.mubr.f32.gmra.mxu0 %v385
      %v576 = vpop.f32.mrf.mxu0
      %v577 = vadd.f32 %v342, %v576
      %v578 = vpop.f32.mrf.mxu0
      %579 = vmatprep.mubr.f32.mxu0 0.0
      %580 = vmatmul.mubr.f32.gmra.mxu0 %v388
      %v581 = vpop.f32.mrf.mxu0
      %v582 = vadd.f32 %v342, %v581
      %v583 = vpop.f32.mrf.mxu0
      %584 = vmatprep.mubr.f32.mxu0 0.0
      %585 = vmatmul.mubr.f32.gmra.mxu0 %v391
      %v586 = vpop.f32.mrf.mxu0
      %v587 = vadd.f32 %v342, %v586
      %v588 = vpop.f32.mrf.mxu0
      %589 = vmatprep.mubr.f32.mxu0 0.0
      %590 = vmatmul.mubr.f32.gmra.mxu0 %v394
      %v591 = vpop.f32.mrf.mxu0
      %v592 = vadd.f32 %v342, %v591
      %v593 = vpop.f32.mrf.mxu0
      %594 = vmatprep.mubr.f32.mxu0 0.0
      %595 = vmatmul.mubr.f32.gmra.mxu0 %v397
      %v596 = vpop.f32.mrf.mxu0
      %v597 = vadd.f32 %v342, %v596
      %v598 = vpop.f32.mrf.mxu0
      %599 = vmatprep.mubr.f32.mxu0 0.0
      %600 = vmatmul.mubr.f32.gmra.mxu0 %v400
      %v601 = vpop.f32.mrf.mxu0
      %v602 = vadd.f32 %v342, %v601
      %v603 = vpop.f32.mrf.mxu0
      %604 = vmatprep.mubr.f32.mxu0 0.0
      %605 = vmatmul.mubr.f32.gmra.mxu0 %v403
      %v606 = vpop.f32.mrf.mxu0
      %v607 = vadd.f32 %v342, %v606
      %v608 = vpop.f32.mrf.mxu0
      %609 = vmatprep.mubr.f32.mxu0 0.0
      %610 = vmatmul.mubr.f32.gmra.mxu0 %v406
      %v611 = vpop.f32.mrf.mxu0
      %v612 = vadd.f32 %v342, %v611
      %v613 = vpop.f32.mrf.mxu0
      %614 = vmatprep.mubr.f32.mxu0 0.0
      %615 = vmatmul.mubr.f32.gmra.mxu0 %v409
      %v616 = vpop.f32.mrf.mxu0
      %v617 = vadd.f32 %v342, %v616
      %v618 = vpop.f32.mrf.mxu0
      %619 = vmatprep.mubr.f32.mxu0 0.0
      %620 = vmatmul.mubr.f32.gmra.mxu0 %v412
      %v621 = vpop.f32.mrf.mxu0
      %v622 = vadd.f32 %v342, %v621
      %v623 = vpop.f32.mrf.mxu0
      %624 = vmatprep.mubr.f32.mxu0 0.0
      %625 = vmatmul.mubr.f32.gmra.mxu0 %v415
      %v626 = vpop.f32.mrf.mxu0
      %v627 = vadd.f32 %v342, %v626
      %v628 = vpop.f32.mrf.mxu0
      %629 = vmatprep.mubr.f32.mxu0 0.0
      %630 = vmatmul.mubr.f32.gmra.mxu0 %v418
      %v631 = vpop.f32.mrf.mxu0
      %v632 = vadd.f32 %v342, %v631
      %v633 = vpop.f32.mrf.mxu0
      %634 = vmatprep.mubr.f32.mxu0 0.0
      %635 = vmatmul.mubr.f32.gmra.mxu0 %v421
      %v636 = vpop.f32.mrf.mxu0
      %v637 = vadd.f32 %v342, %v636
      %v638 = vpop.f32.mrf.mxu0
      %639 = vmatprep.mubr.f32.mxu0 0.0
      %640 = vmatmul.mubr.f32.gmra.mxu0 %v424
      %v641 = vpop.f32.mrf.mxu0
      %v642 = vadd.f32 %v342, %v641
      %v643 = vpop.f32.mrf.mxu0
      %644 = vmatprep.mubr.f32.mxu0 0.0
      %645 = vmatmul.mubr.f32.gmra.mxu0 %v427
      %v646 = vpop.f32.mrf.mxu0
      %v647 = vadd.f32 %v342, %v646
      %v648 = vpop.f32.mrf.mxu0
      %649 = vmatprep.mubr.f32.mxu0 0.0
      %650 = vmatmul.mubr.f32.gmra.mxu0 %v430
      %v651 = vpop.f32.mrf.mxu0
      %v652 = vadd.f32 %v342, %v651
      %v653 = vpop.f32.mrf.mxu0
      %654 = vmatprep.mubr.f32.mxu0 0.0
      %655 = vmatmul.mubr.f32.gmra.mxu0 %v433
      %v656 = vpop.f32.mrf.mxu0
      %v657 = vadd.f32 %v342, %v656
      %v658 = vpop.f32.mrf.mxu0
      %659 = vmatprep.mubr.f32.mxu0 0.0
      %660 = vmatmul.mubr.f32.gmra.mxu0 %v436
      %v661 = vpop.f32.mrf.mxu0
      %v662 = vadd.f32 %v342, %v661
      %v663 = vpop.f32.mrf.mxu0
      %664 = vmatprep.mubr.f32.mxu0 0.0
      %665 = vmatmul.mubr.f32.gmra.mxu0 %v439
      %v666 = vpop.f32.mrf.mxu0
      %v667 = vadd.f32 %v342, %v666
      %v668 = vpop.f32.mrf.mxu0
      %669 = vdwg.mxu0
      %v670 = vmax.f32 %v512, 0.0
      %v671 = vmax.f32 %v517, 0.0
      %v672 = vmax.f32 %v522, 0.0
      %v673 = vmax.f32 %v527, 0.0
      %v674 = vmax.f32 %v532, 0.0
      %v675 = vmax.f32 %v537, 0.0
      %v676 = vmax.f32 %v542, 0.0
      %v677 = vmax.f32 %v547, 0.0
      %v678 = vmax.f32 %v552, 0.0
      %v679 = vmax.f32 %v557, 0.0
      %v680 = vmax.f32 %v562, 0.0
      %v681 = vmax.f32 %v567, 0.0
      %v682 = vmax.f32 %v572, 0.0
      %v683 = vmax.f32 %v577, 0.0
      %v684 = vmax.f32 %v582, 0.0
      %v685 = vmax.f32 %v587, 0.0
      %v686 = vmax.f32 %v592, 0.0
      %v687 = vmax.f32 %v597, 0.0
      %v688 = vmax.f32 %v602, 0.0
      %v689 = vmax.f32 %v607, 0.0
      %v690 = vmax.f32 %v612, 0.0
      %v691 = vmax.f32 %v617, 0.0
      %v692 = vmax.f32 %v622, 0.0
      %v693 = vmax.f32 %v627, 0.0
      %v694 = vmax.f32 %v632, 0.0
      %v695 = vmax.f32 %v637, 0.0
      %v696 = vmax.f32 %v642, 0.0
      %v697 = vmax.f32 %v647, 0.0
      %v698 = vmax.f32 %v652, 0.0
      %v699 = vmax.f32 %v657, 0.0
      %v700 = vmax.f32 %v662, 0.0
      %v701 = vmax.f32 %v667, 0.0
      %v702 = vld [vmem:[%s3] sm:$0xff]
      %v703 = vld [vmem:[%s3 + $0x8] sm:$0xff]
      %v704 = vld [vmem:[%s3 + $0x10] sm:$0xff]
      %v705 = vld [vmem:[%s3 + $0x18] sm:$0xff]
      %v706 = vld [vmem:[%s3 + $0x20] sm:$0xff]
      %v707 = vld [vmem:[%s3 + $0x28] sm:$0xff]
      %v708 = vld [vmem:[%s3 + $0x30] sm:$0xff]
      %v709 = vld [vmem:[%s3 + $0x38] sm:$0xff]
      %v710 = vld [vmem:[%s4] sm:$0x1]
      %v712 = vlaneseq
      %v713 = vshrl.u32 %v712, 7
      %v714 = vsub.s32 0, %v713
      %v715 = vrot.slane %v710, %v714
      %vm717 = vcmask 523264
      %v719 = vsel %vm717, %v670, 0
      %v722 = vsel %vm717, %v671, 0
      %v725 = vsel %vm717, %v672, 0
      %v728 = vsel %vm717, %v673, 0
      %v731 = vsel %vm717, %v674, 0
      %v734 = vsel %vm717, %v675, 0
      %v737 = vsel %vm717, %v676, 0
      %v740 = vsel %vm717, %v677, 0
      %v743 = vsel %vm717, %v678, 0
      %v746 = vsel %vm717, %v679, 0
      %v749 = vsel %vm717, %v680, 0
      %v752 = vsel %vm717, %v681, 0
      %v755 = vsel %vm717, %v682, 0
      %v758 = vsel %vm717, %v683, 0
      %v761 = vsel %vm717, %v684, 0
      %v764 = vsel %vm717, %v685, 0
      %v767 = vsel %vm717, %v686, 0
      %v770 = vsel %vm717, %v687, 0
      %v773 = vsel %vm717, %v688, 0
      %v776 = vsel %vm717, %v689, 0
      %v779 = vsel %vm717, %v690, 0
      %v782 = vsel %vm717, %v691, 0
      %v785 = vsel %vm717, %v692, 0
      %v788 = vsel %vm717, %v693, 0
      %v791 = vsel %vm717, %v694, 0
      %v794 = vsel %vm717, %v695, 0
      %v797 = vsel %vm717, %v696, 0
      %v800 = vsel %vm717, %v697, 0
      %v803 = vsel %vm717, %v698, 0
      %v806 = vsel %vm717, %v699, 0
      %v809 = vsel %vm717, %v700, 0
      %v812 = vsel %vm717, %v701, 0
      %814 = vmatprep.subr.mxu0 0.0
      %815 = vmatpush1.msra.mxu0 0.0
      %816 = vmatprep.subr.mxu0 0.0
      %817 = vmatpush1.msra.mxu0 0.0
      %818 = vmatprep.subr.mxu0 0.0
      %819 = vmatpush1.msra.mxu0 0.0
      %820 = vmatprep.subr.mxu0 0.0
      %821 = vmatpush1.msra.mxu0 0.0
      %822 = vmatprep.subr.mxu0 0.0
      %823 = vmatpush1.msra.mxu0 0.0
      %824 = vmatprep.subr.mxu0 0.0
      %825 = vmatpush1.msra.mxu0 0.0
      %826 = vmatprep.subr.mxu0 0.0
      %827 = vmatpush1.msra.mxu0 0.0
      %828 = vmatprep.subr.mxu0 0.0
      %829 = vmatpush1.msra.mxu0 0.0
      %830 = vmatprep.subr.mxu0 0.0
      %831 = vmatpush1.msra.mxu0 %v709
      %832 = vmatprep.subr.mxu0 0.0
      %833 = vmatpush1.msra.mxu0 %v708
      %834 = vmatprep.subr.mxu0 0.0
      %835 = vmatpush1.msra.mxu0 %v707
      %836 = vmatprep.subr.mxu0 0.0
      %837 = vmatpush1.msra.mxu0 %v706
      %838 = vmatprep.subr.mxu0 0.0
      %839 = vmatpush1.msra.mxu0 %v705
      %840 = vmatprep.subr.mxu0 0.0
      %841 = vmatpush1.msra.mxu0 %v704
      %842 = vmatprep.subr.mxu0 0.0
      %843 = vmatpush1.msra.mxu0 %v703
      %844 = vmatprep.subr.mxu0 0.0
      %845 = vmatpush1.msra.mxu0 %v702
      %846 = vmatprep.subr.mxu0 0.0
      %847 = vmatpush2.msra.mxu0 0.0
      %848 = vmatprep.subr.mxu0 0.0
      %849 = vmatpush2.msra.mxu0 0.0
      %850 = vmatprep.subr.mxu0 0.0
      %851 = vmatpush2.msra.mxu0 0.0
      %852 = vmatprep.subr.mxu0 0.0
      %853 = vmatpush2.msra.mxu0 0.0
      %854 = vmatprep.subr.mxu0 0.0
      %855 = vmatpush2.msra.mxu0 0.0
      %856 = vmatprep.subr.mxu0 0.0
      %857 = vmatpush2.msra.mxu0 0.0
      %858 = vmatprep.subr.mxu0 0.0
      %859 = vmatpush2.msra.mxu0 0.0
      %860 = vmatprep.subr.mxu0 0.0
      %861 = vmatpush2.msra.mxu0 0.0
      %862 = vmatprep.subr.mxu0 0.0
      %863 = vmatpush2.msra.mxu0 0.0
      %864 = vmatprep.subr.mxu0 0.0
      %865 = vmatpush2.msra.mxu0 0.0
      %866 = vmatprep.subr.mxu0 0.0
      %867 = vmatpush2.msra.mxu0 0.0
      %868 = vmatprep.subr.mxu0 0.0
      %869 = vmatpush2.msra.mxu0 0.0
      %870 = vmatprep.subr.mxu0 0.0
      %871 = vmatpush2.msra.mxu0 0.0
      %872 = vmatprep.subr.mxu0 0.0
      %873 = vmatpush2.msra.mxu0 0.0
      %874 = vmatprep.subr.mxu0 0.0
      %875 = vmatpush2.msra.mxu0 0.0
      %876 = vmatprep.subr.mxu0 0.0
      %877 = vmatpush2.msra.mxu0 0.0
      %878 = vmatprep.mubr.f32.mxu0 0.0
      %879 = vmatmul.mubr.f32.gmra.mxu0 %v719
      %v880 = vpop.f32.mrf.mxu0
      %v881 = vadd.f32 %v715, %v880
      %v882 = vpop.f32.mrf.mxu0
      %883 = vmatprep.mubr.f32.mxu0 0.0
      %884 = vmatmul.mubr.f32.gmra.mxu0 %v722
      %v885 = vpop.f32.mrf.mxu0
      %v886 = vadd.f32 %v715, %v885
      %v887 = vpop.f32.mrf.mxu0
      %888 = vmatprep.mubr.f32.mxu0 0.0
      %889 = vmatmul.mubr.f32.gmra.mxu0 %v725
      %v890 = vpop.f32.mrf.mxu0
      %v891 = vadd.f32 %v715, %v890
      %v892 = vpop.f32.mrf.mxu0
      %893 = vmatprep.mubr.f32.mxu0 0.0
      %894 = vmatmul.mubr.f32.gmra.mxu0 %v728
      %v895 = vpop.f32.mrf.mxu0
      %v896 = vadd.f32 %v715, %v895
      %v897 = vpop.f32.mrf.mxu0
      %898 = vmatprep.mubr.f32.mxu0 0.0
      %899 = vmatmul.mubr.f32.gmra.mxu0 %v731
      %v900 = vpop.f32.mrf.mxu0
      %v901 = vadd.f32 %v715, %v900
      %v902 = vpop.f32.mrf.mxu0
      %903 = vmatprep.mubr.f32.mxu0 0.0
      %904 = vmatmul.mubr.f32.gmra.mxu0 %v734
      %v905 = vpop.f32.mrf.mxu0
      %v906 = vadd.f32 %v715, %v905
      %v907 = vpop.f32.mrf.mxu0
      %908 = vmatprep.mubr.f32.mxu0 0.0
      %909 = vmatmul.mubr.f32.gmra.mxu0 %v737
      %v910 = vpop.f32.mrf.mxu0
      %v911 = vadd.f32 %v715, %v910
      %v912 = vpop.f32.mrf.mxu0
      %913 = vmatprep.mubr.f32.mxu0 0.0
      %914 = vmatmul.mubr.f32.gmra.mxu0 %v740
      %v915 = vpop.f32.mrf.mxu0
      %v916 = vadd.f32 %v715, %v915
      %v917 = vpop.f32.mrf.mxu0
      %918 = vmatprep.mubr.f32.mxu0 0.0
      %919 = vmatmul.mubr.f32.gmra.mxu0 %v743
      %v920 = vpop.f32.mrf.mxu0
      %v921 = vadd.f32 %v715, %v920
      %v922 = vpop.f32.mrf.mxu0
      %923 = vmatprep.mubr.f32.mxu0 0.0
      %924 = vmatmul.mubr.f32.gmra.mxu0 %v746
      %v925 = vpop.f32.mrf.mxu0
      %v926 = vadd.f32 %v715, %v925
      %v927 = vpop.f32.mrf.mxu0
      %928 = vmatprep.mubr.f32.mxu0 0.0
      %929 = vmatmul.mubr.f32.gmra.mxu0 %v749
      %v930 = vpop.f32.mrf.mxu0
      %v931 = vadd.f32 %v715, %v930
      %v932 = vpop.f32.mrf.mxu0
      %933 = vmatprep.mubr.f32.mxu0 0.0
      %934 = vmatmul.mubr.f32.gmra.mxu0 %v752
      %v935 = vpop.f32.mrf.mxu0
      %v936 = vadd.f32 %v715, %v935
      %v937 = vpop.f32.mrf.mxu0
      %938 = vmatprep.mubr.f32.mxu0 0.0
      %939 = vmatmul.mubr.f32.gmra.mxu0 %v755
      %v940 = vpop.f32.mrf.mxu0
      %v941 = vadd.f32 %v715, %v940
      %v942 = vpop.f32.mrf.mxu0
      %943 = vmatprep.mubr.f32.mxu0 0.0
      %944 = vmatmul.mubr.f32.gmra.mxu0 %v758
      %v945 = vpop.f32.mrf.mxu0
      %v946 = vadd.f32 %v715, %v945
      %v947 = vpop.f32.mrf.mxu0
      %948 = vmatprep.mubr.f32.mxu0 0.0
      %949 = vmatmul.mubr.f32.gmra.mxu0 %v761
      %v950 = vpop.f32.mrf.mxu0
      %v951 = vadd.f32 %v715, %v950
      %v952 = vpop.f32.mrf.mxu0
      %953 = vmatprep.mubr.f32.mxu0 0.0
      %954 = vmatmul.mubr.f32.gmra.mxu0 %v764
      %v955 = vpop.f32.mrf.mxu0
      %v956 = vadd.f32 %v715, %v955
      %v957 = vpop.f32.mrf.mxu0
      %958 = vmatprep.mubr.f32.mxu0 0.0
      %959 = vmatmul.mubr.f32.gmra.mxu0 %v767
      %v960 = vpop.f32.mrf.mxu0
      %v961 = vadd.f32 %v715, %v960
      %v962 = vpop.f32.mrf.mxu0
      %963 = vmatprep.mubr.f32.mxu0 0.0
      %964 = vmatmul.mubr.f32.gmra.mxu0 %v770
      %v965 = vpop.f32.mrf.mxu0
      %v966 = vadd.f32 %v715, %v965
      %v967 = vpop.f32.mrf.mxu0
      %968 = vmatprep.mubr.f32.mxu0 0.0
      %969 = vmatmul.mubr.f32.gmra.mxu0 %v773
      %v970 = vpop.f32.mrf.mxu0
      %v971 = vadd.f32 %v715, %v970
      %v972 = vpop.f32.mrf.mxu0
      %973 = vmatprep.mubr.f32.mxu0 0.0
      %974 = vmatmul.mubr.f32.gmra.mxu0 %v776
      %v975 = vpop.f32.mrf.mxu0
      %v976 = vadd.f32 %v715, %v975
      %v977 = vpop.f32.mrf.mxu0
      %978 = vmatprep.mubr.f32.mxu0 0.0
      %979 = vmatmul.mubr.f32.gmra.mxu0 %v779
      %v980 = vpop.f32.mrf.mxu0
      %v981 = vadd.f32 %v715, %v980
      %v982 = vpop.f32.mrf.mxu0
      %983 = vmatprep.mubr.f32.mxu0 0.0
      %984 = vmatmul.mubr.f32.gmra.mxu0 %v782
      %v985 = vpop.f32.mrf.mxu0
      %v986 = vadd.f32 %v715, %v985
      %v987 = vpop.f32.mrf.mxu0
      %988 = vmatprep.mubr.f32.mxu0 0.0
      %989 = vmatmul.mubr.f32.gmra.mxu0 %v785
      %v990 = vpop.f32.mrf.mxu0
      %v991 = vadd.f32 %v715, %v990
      %v992 = vpop.f32.mrf.mxu0
      %993 = vmatprep.mubr.f32.mxu0 0.0
      %994 = vmatmul.mubr.f32.gmra.mxu0 %v788
      %v995 = vpop.f32.mrf.mxu0
      %v996 = vadd.f32 %v715, %v995
      %v997 = vpop.f32.mrf.mxu0
      %998 = vmatprep.mubr.f32.mxu0 0.0
      %999 = vmatmul.mubr.f32.gmra.mxu0 %v791
      %v1000 = vpop.f32.mrf.mxu0
      %v1001 = vadd.f32 %v715, %v1000
      %v1002 = vpop.f32.mrf.mxu0
      %1003 = vmatprep.mubr.f32.mxu0 0.0
      %1004 = vmatmul.mubr.f32.gmra.mxu0 %v794
      %v1005 = vpop.f32.mrf.mxu0
      %v1006 = vadd.f32 %v715, %v1005
      %v1007 = vpop.f32.mrf.mxu0
      %1008 = vmatprep.mubr.f32.mxu0 0.0
      %1009 = vmatmul.mubr.f32.gmra.mxu0 %v797
      %v1010 = vpop.f32.mrf.mxu0
      %v1011 = vadd.f32 %v715, %v1010
      %v1012 = vpop.f32.mrf.mxu0
      %1013 = vmatprep.mubr.f32.mxu0 0.0
      %1014 = vmatmul.mubr.f32.gmra.mxu0 %v800
      %v1015 = vpop.f32.mrf.mxu0
      %v1016 = vadd.f32 %v715, %v1015
      %v1017 = vpop.f32.mrf.mxu0
      %1018 = vmatprep.mubr.f32.mxu0 0.0
      %1019 = vmatmul.mubr.f32.gmra.mxu0 %v803
      %v1020 = vpop.f32.mrf.mxu0
      %v1021 = vadd.f32 %v715, %v1020
      %v1022 = vpop.f32.mrf.mxu0
      %1023 = vmatprep.mubr.f32.mxu0 0.0
      %1024 = vmatmul.mubr.f32.gmra.mxu0 %v806
      %v1025 = vpop.f32.mrf.mxu0
      %v1026 = vadd.f32 %v715, %v1025
      %v1027 = vpop.f32.mrf.mxu0
      %1028 = vmatprep.mubr.f32.mxu0 0.0
      %1029 = vmatmul.mubr.f32.gmra.mxu0 %v809
      %v1030 = vpop.f32.mrf.mxu0
      %v1031 = vadd.f32 %v715, %v1030
      %v1032 = vpop.f32.mrf.mxu0
      %1033 = vmatprep.mubr.f32.mxu0 0.0
      %1034 = vmatmul.mubr.f32.gmra.mxu0 %v812
      %v1035 = vpop.f32.mrf.mxu0
      %v1036 = vadd.f32 %v715, %v1035
      %v1037 = vpop.f32.mrf.mxu0
      %1038 = vdwg.mxu0
      %v1039 = vmax.f32 %v881, 0.0
      %v1040 = vmax.f32 %v886, 0.0
      %v1041 = vmax.f32 %v891, 0.0
      %v1042 = vmax.f32 %v896, 0.0
      %v1043 = vmax.f32 %v901, 0.0
      %v1044 = vmax.f32 %v906, 0.0
      %v1045 = vmax.f32 %v911, 0.0
      %v1046 = vmax.f32 %v916, 0.0
      %v1047 = vmax.f32 %v921, 0.0
      %v1048 = vmax.f32 %v926, 0.0
      %v1049 = vmax.f32 %v931, 0.0
      %v1050 = vmax.f32 %v936, 0.0
      %v1051 = vmax.f32 %v941, 0.0
      %v1052 = vmax.f32 %v946, 0.0
      %v1053 = vmax.f32 %v951, 0.0
      %v1054 = vmax.f32 %v956, 0.0
      %v1055 = vmax.f32 %v961, 0.0
      %v1056 = vmax.f32 %v966, 0.0
      %v1057 = vmax.f32 %v971, 0.0
      %v1058 = vmax.f32 %v976, 0.0
      %v1059 = vmax.f32 %v981, 0.0
      %v1060 = vmax.f32 %v986, 0.0
      %v1061 = vmax.f32 %v991, 0.0
      %v1062 = vmax.f32 %v996, 0.0
      %v1063 = vmax.f32 %v1001, 0.0
      %v1064 = vmax.f32 %v1006, 0.0
      %v1065 = vmax.f32 %v1011, 0.0
      %v1066 = vmax.f32 %v1016, 0.0
      %v1067 = vmax.f32 %v1021, 0.0
      %v1068 = vmax.f32 %v1026, 0.0
      %v1069 = vmax.f32 %v1031, 0.0
      %v1070 = vmax.f32 %v1036, 0.0
      %v1071 = vld [vmem:[%s5] sm:$0x1]
      %s1072 = sld [smem:[#allocation2]]
      %v1073 = vstv %s1072
      %v1075 = vsel %vm717, %v1071, 0
      %v1078 = vsel %vm717, %v1039, 0
      %v1081 = vsel %vm717, %v1040, 0
      %v1084 = vsel %vm717, %v1041, 0
      %v1087 = vsel %vm717, %v1042, 0
      %v1090 = vsel %vm717, %v1043, 0
      %v1093 = vsel %vm717, %v1044, 0
      %v1096 = vsel %vm717, %v1045, 0
      %v1099 = vsel %vm717, %v1046, 0
      %v1102 = vsel %vm717, %v1047, 0
      %v1105 = vsel %vm717, %v1048, 0
      %v1108 = vsel %vm717, %v1049, 0
      %v1111 = vsel %vm717, %v1050, 0
      %v1114 = vsel %vm717, %v1051, 0
      %v1117 = vsel %vm717, %v1052, 0
      %v1120 = vsel %vm717, %v1053, 0
      %v1123 = vsel %vm717, %v1054, 0
      %v1126 = vsel %vm717, %v1055, 0
      %v1129 = vsel %vm717, %v1056, 0
      %v1132 = vsel %vm717, %v1057, 0
      %v1135 = vsel %vm717, %v1058, 0
      %v1138 = vsel %vm717, %v1059, 0
      %v1141 = vsel %vm717, %v1060, 0
      %v1144 = vsel %vm717, %v1061, 0
      %v1147 = vsel %vm717, %v1062, 0
      %v1150 = vsel %vm717, %v1063, 0
      %v1153 = vsel %vm717, %v1064, 0
      %v1156 = vsel %vm717, %v1065, 0
      %v1159 = vsel %vm717, %v1066, 0
      %v1162 = vsel %vm717, %v1067, 0
      %v1165 = vsel %vm717, %v1068, 0
      %v1168 = vsel %vm717, %v1069, 0
      %v1171 = vsel %vm717, %v1070, 0
      %1173 = vmatprep.subr.mxu0 0.0
      %1174 = vmatpush1.xpose.msra.mxu0 %v1123
      %1175 = vmatprep.subr.mxu0 0.0
      %1176 = vmatpush1.xpose.msra.mxu0 %v1120
      %1177 = vmatprep.subr.mxu0 0.0
      %1178 = vmatpush1.xpose.msra.mxu0 %v1117
      %1179 = vmatprep.subr.mxu0 0.0
      %1180 = vmatpush1.xpose.msra.mxu0 %v1114
      %1181 = vmatprep.subr.mxu0 0.0
      %1182 = vmatpush1.xpose.msra.mxu0 %v1111
      %1183 = vmatprep.subr.mxu0 0.0
      %1184 = vmatpush1.xpose.msra.mxu0 %v1108
      %1185 = vmatprep.subr.mxu0 0.0
      %1186 = vmatpush1.xpose.msra.mxu0 %v1105
      %1187 = vmatprep.subr.mxu0 0.0
      %1188 = vmatpush1.xpose.msra.mxu0 %v1102
      %1189 = vmatprep.subr.mxu0 0.0
      %1190 = vmatpush1.xpose.msra.mxu0 %v1099
      %1191 = vmatprep.subr.mxu0 0.0
      %1192 = vmatpush1.xpose.msra.mxu0 %v1096
      %1193 = vmatprep.subr.mxu0 0.0
      %1194 = vmatpush1.xpose.msra.mxu0 %v1093
      %1195 = vmatprep.subr.mxu0 0.0
      %1196 = vmatpush1.xpose.msra.mxu0 %v1090
      %1197 = vmatprep.subr.mxu0 0.0
      %1198 = vmatpush1.xpose.msra.mxu0 %v1087
      %1199 = vmatprep.subr.mxu0 0.0
      %1200 = vmatpush1.xpose.msra.mxu0 %v1084
      %1201 = vmatprep.subr.mxu0 0.0
      %1202 = vmatpush1.xpose.msra.mxu0 %v1081
      %1203 = vmatprep.subr.mxu0 0.0
      %1204 = vmatpush1.xpose.msra.mxu0 %v1078
      %1205 = vmatprep.subr.mxu0 0.0
      %1206 = vmatpush2.xpose.msra.mxu0 %v1171
      %1207 = vmatprep.subr.mxu0 0.0
      %1208 = vmatpush2.xpose.msra.mxu0 %v1168
      %1209 = vmatprep.subr.mxu0 0.0
      %1210 = vmatpush2.xpose.msra.mxu0 %v1165
      %1211 = vmatprep.subr.mxu0 0.0
      %1212 = vmatpush2.xpose.msra.mxu0 %v1162
      %1213 = vmatprep.subr.mxu0 0.0
      %1214 = vmatpush2.xpose.msra.mxu0 %v1159
      %1215 = vmatprep.subr.mxu0 0.0
      %1216 = vmatpush2.xpose.msra.mxu0 %v1156
      %1217 = vmatprep.subr.mxu0 0.0
      %1218 = vmatpush2.xpose.msra.mxu0 %v1153
      %1219 = vmatprep.subr.mxu0 0.0
      %1220 = vmatpush2.xpose.msra.mxu0 %v1150
      %1221 = vmatprep.subr.mxu0 0.0
      %1222 = vmatpush2.xpose.msra.mxu0 %v1147
      %1223 = vmatprep.subr.mxu0 0.0
      %1224 = vmatpush2.xpose.msra.mxu0 %v1144
      %1225 = vmatprep.subr.mxu0 0.0
      %1226 = vmatpush2.xpose.msra.mxu0 %v1141
      %1227 = vmatprep.subr.mxu0 0.0
      %1228 = vmatpush2.xpose.msra.mxu0 %v1138
      %1229 = vmatprep.subr.mxu0 0.0
      %1230 = vmatpush2.xpose.msra.mxu0 %v1135
      %1231 = vmatprep.subr.mxu0 0.0
      %1232 = vmatpush2.xpose.msra.mxu0 %v1132
      %1233 = vmatprep.subr.mxu0 0.0
      %1234 = vmatpush2.xpose.msra.mxu0 %v1129
      %1235 = vmatprep.subr.mxu0 0.0
      %1236 = vmatpush2.xpose.msra.mxu0 %v1126
      %1237 = vmatprep.mubr.f32.mxu0 0.0
      %1238 = vmatmul.mubr.f32.gmra.mxu0 %v1075
      %v1239 = vpop.f32.mrf.mxu0
      %v1240 = vadd.f32 %v1073, %v1239
      %v1241 = vpop.f32.mrf.mxu0
      %v1242 = vadd.f32 %v1073, %v1241
      %1243 = vdwg.mxu0
      %v1246 = vcombine.low %v1240, %v1242
      %v1248 = vunpack.c.l.s4 1966171168
      %v1249 = vunpack.c.0.s8 %v1248
      %v1250 = vlaneseq
      %v1251 = vshrl.u32 %v1250, 7
      %v1252 = vsub.s32 %v1249, %v1251
      %v1253 = vrot.slane %v1246, %v1252
      %v1255 = vunpack.c.l.s4 1966171168
      %v1256 = vunpack.c.0.s8 %v1255
      %v1257 = vlaneseq
      %v1258 = vshrl.u32 %v1257, 7
      %v1259 = vsub.s32 %v1256, %v1258
      %v1260 = vrot.slane %v1253, %v1259
      %v1262 = vlaneseq
      %vm1263 = vcmp.ge.s32.totalorder %v1262, 0
      %vm1264 = vcmp.lt.s32.totalorder %v1262, 256
      %vm1265 = vmand %vm1263, %vm1264
      %1266 = vst.msk [vmem:[%s299] sm:$0x3] %vm1265, %v1260
      %s1267 = smul.u32 2, %s19
      %p1268 = scmp.lt.s32.totalorder %s1267, 3
      %s1269 = scalar_select %p1268, %s1267, 3
      %s1270 = scalar_lea.vmem %s7, %s1269
      // Predicated region
      $region49: #{model_critic_forward.1} parent=47 // pred_check
        %p1271 = pneg %p189
      $region50: #{model_critic_forward.1} parent=47 // pred_check_branch
        %1273 = sbr.rel (%p1271) target = $region52
      $region51: #{model_critic_forward.1} parent=47 // pred_region
        %s1274 = smul.u32 2, %s19
      $region52: #{model_critic_forward.1} parent=47 // pred_fallthru
        _
    $region48: #{model_critic_forward.1} parent=5 // pred_fallthru
      _
    %p1275 = scmp.le.s32.totalorder 2, %s14
    // Predicated region
    $region53: #{model_critic_forward.1} parent=5 // pred_check
      %p1276 = pneg %p1275
    $region54: #{model_critic_forward.1} parent=5 // pred_check_branch
      %1278 = sbr.rel (%p1276) target = $region56
    $region55: #{model_critic_forward.1} parent=5 // pred_region
      %s1279 = ssub.s32 %s14, 2
      // Predicated region
      $region57: #{model_critic_forward.1} parent=55 // pred_check
        %p1280 = pneg %p195
      $region58: #{model_critic_forward.1} parent=55 // pred_check_branch
        %1282 = sbr.rel (%p1280) target = $region60
      $region59: #{model_critic_forward.1} parent=55 // pred_region
        %s1283 = smul.u32 2, %s20
        %p1284 = scmp.lt.s32.totalorder %s1283, 3
        %s1285 = scalar_select %p1284, %s1283, 3
        %s1286 = scalar_lea.vmem %s7, %s1285
      $region60: #{model_critic_forward.1} parent=55 // pred_fallthru
        _
    $region56: #{model_critic_forward.1} parent=5 // pred_fallthru
      _
  $region6: #{model_critic_forward.1} parent=0 // loop_footer
    %s18 = sadd.s32 1, %s14
  $region7: #{model_critic_forward.1} parent=0 // loop_footer_branch
    %13 = sbr.rel target = $region3
  $region8: #{model_critic_forward.1} parent=0 // loop_exit
    _

</llo_original>
